<compile_context>
chip_gen: v5e
topology: v5e:2x2
jax: 0.10.0
libtpu: 0.0.40
codegen_flags: <defaults>
</compile_context>

<pallas_src>
import jax
import jax.numpy as jnp
from jax.experimental import pallas as pl
from jax.experimental.pallas import tpu as pltpu


_LANE = 128
_VMEM = pl.BlockSpec(memory_space=pltpu.MemorySpace.VMEM)


def _round_up(x, m):
    return ((x + m - 1) // m) * m


# ----------------------------- Pallas kernel -------------------------------


def _gcn_fused_kernel(adj_ref, x_ref, w1_ref, w2_ref, wsm_ref, wf2_ref,
                      bias_ref, o_ref):
    f32, bf16 = jnp.float32, jnp.bfloat16
    adj = adj_ref[...]                       # [N, N] bf16, read once, used 3x

    # Static lane-aligned bias slices: 512 | 128 | 128 | 128 | out_pad (f32).
    b1 = bias_ref[:, 0:512]
    b2 = bias_ref[:, 512:640]
    b3 = bias_ref[:, 640:768]
    bf1 = bias_ref[:, 768:896]
    bf2 = bias_ref[:, 896:]

    # Stacked small weights: rows 0:128 = W3.T (padded), 128:256 = Wf1.T (padded).
    w3 = wsm_ref[0:128, :]
    wf1 = wsm_ref[128:256, :]

    # Layer 1 (F_in -> 512): aggregate first (K = F_in_pad is the small dim),
    # then project.  bf16 MXU inputs, f32 accumulation, f32 elementwise.
    h = jnp.dot(adj, x_ref[...], preferred_element_type=f32)
    h = jnp.dot(h.astype(bf16), w1_ref[...], preferred_element_type=f32) + b1
    h = jnp.maximum(h, 0.0)
    # dropout(p=0.2): identity in eval mode.

    # Layer 2 (512 -> 128), reassociated: adj @ (h @ W2) shrinks the
    # N^2-scaled K from 512 to 128.  Mathematically exact.
    p = jnp.dot(h.astype(bf16), w2_ref[...], preferred_element_type=f32)
    h = jnp.maximum(
        jnp.dot(adj, p.astype(bf16), preferred_element_type=f32) + b2, 0.0)

    # Layer 3 (128 -> 64, zero-padded to 128): project, then aggregate.
    p = jnp.dot(h.astype(bf16), w3, preferred_element_type=f32)
    h = jnp.maximum(
        jnp.dot(adj, p.astype(bf16), preferred_element_type=f32) + b3, 0.0)

    # FC tail (row-local), all widths lane-dense (128 / out_pad).
    h = jnp.maximum(
        jnp.dot(h.astype(bf16), wf1, preferred_element_type=f32) + bf1, 0.0)
    out = jnp.dot(h.astype(bf16), wf2_ref[...], preferred_element_type=f32) + bf2
    o_ref[...] = out.astype(o_ref.dtype)


# ----------------------------- wrapper --------------------------------------


@jax.jit
def gcn_forward(params, adj, features):
    n, f_in = features.shape
    w1, b1 = params["gcn1"]
    w2, b2 = params["gcn2"]
    w3, b3 = params["gcn3"]
    wf1, bf1 = params["fcl1"]
    wf2, bf2 = params["fcl2"]
    out_dim = wf2.shape[0]
    out_pad = _round_up(out_dim, _LANE)
    f_in_pad = _round_up(f_in, _LANE)

    bf16 = jnp.bfloat16

    # bf16 MXU inputs; zero-pad all widths to lane-dense multiples of 128.
    # Padding is exact: padded feature columns, weight rows/cols and bias
    # entries are zero, and ReLU(0) = 0.
    adj_b = adj.astype(bf16)
    x_b = jnp.pad(features, ((0, 0), (0, f_in_pad - f_in))).astype(bf16)
    w1t = jnp.pad(w1.T, ((0, f_in_pad - f_in), (0, 0))).astype(bf16)      # [f_in_pad, 512]
    w2t = w2.T.astype(bf16)                                                # [512, 128]
    w3t = jnp.pad(w3.T, ((0, 0), (0, 128 - 64))).astype(bf16)              # [128, 128]
    wf1t = jnp.pad(wf1.T, ((0, 128 - 64), (0, 128 - 16))).astype(bf16)     # [128, 128]
    w_small = jnp.concatenate([w3t, wf1t], axis=0)                         # [256, 128]
    wf2t = jnp.pad(wf2.T,
                   ((0, 128 - 16), (0, out_pad - out_dim))).astype(bf16)   # [128, out_pad]

    # Biases stay f32 (elementwise math in f32), packed into one lane-aligned
    # operand: 512 | 128 | 128(=64+pad) | 128(=16+pad) | out_pad.
    bias = jnp.concatenate([
        b1,
        b2,
        jnp.pad(b3, (0, 128 - 64)),
        jnp.pad(bf1, (0, 128 - 16)),
        jnp.pad(bf2, (0, out_pad - out_dim)),
    ]).astype(jnp.float32).reshape(1, -1)

    operands = (adj_b, x_b, w1t, w2t, w_small, wf2t, bias)

    # VMEM budget derived from actual buffer sizes (inputs may be
    # double-buffered) + f32 intermediates, clamped to the chip's capacity.
    operand_bytes = sum(int(x.size) * x.dtype.itemsize for x in operands)
    out_bytes = 4 * n * out_pad
    work_bytes = 4 * n * (f_in_pad + 512 + 2 * 128 + out_pad) * 2
    try:
        phys_vmem = int(pltpu.get_tpu_info().vmem_capacity_bytes)
    except Exception:
        phys_vmem = 64 * 1024 * 1024          # conservative (v7x per-TC)
    vmem_limit = int(min(int(phys_vmem * 0.8),
                         max(32 * 1024 * 1024,
                             2 * (operand_bytes + out_bytes) + work_bytes)))

    # Advisory cost estimate for XLA's scheduler.
    flops = 2 * n * (n * f_in_pad + f_in_pad * 512      # layer 1
                     + 512 * 128 + n * 128              # layer 2 (reassoc.)
                     + 128 * 128 + n * 128              # layer 3 (reassoc.)
                     + 128 * 128 + 128 * out_pad)       # FC tail
    bytes_accessed = operand_bytes + out_bytes

    out = pl.pallas_call(
        _gcn_fused_kernel,
        out_shape=jax.ShapeDtypeStruct((n, out_pad), jnp.float32),
        in_specs=[_VMEM] * len(operands),
        out_specs=_VMEM,
        compiler_params=pltpu.CompilerParams(vmem_limit_bytes=vmem_limit),
        cost_estimate=pl.CostEstimate(
            flops=flops, transcendentals=0, bytes_accessed=bytes_accessed),
    )(*operands)

    return out[:, :out_dim]


# ----------------------------- parameter init ------------------------------


def _init_linear(key, out_features, in_features):
    """PyTorch nn.Linear-style init: U(-1/sqrt(fan_in), 1/sqrt(fan_in))."""
    kw, kb = jax.random.split(key)
    bound = 1.0 / jnp.sqrt(jnp.float32(in_features))
    w = jax.random.uniform(kw, (out_features, in_features), jnp.float32,
                           -bound, bound)
    b = jax.random.uniform(kb, (out_features,), jnp.float32, -bound, bound)
    return w, b


def init_gcn_params(key, input_size, output_size):
    keys = jax.random.split(key, 5)
    return {
        "gcn1": _init_linear(keys[0], 512, input_size),
        "gcn2": _init_linear(keys[1], 128, 512),
        "gcn3": _init_linear(keys[2], 64, 128),
        "fcl1": _init_linear(keys[3], 16, 64),
        "fcl2": _init_linear(keys[4], output_size, 16),
    }


# ----------------------------- main -----------------------------------------

if __name__ == "__main__":
    N = 64            # number of graph nodes
    INPUT_SIZE = 32   # per-node feature dim
    OUTPUT_SIZE = 8   # classifier output dim

    key = jax.random.PRNGKey(0)
    k_adj, k_feat, k_params = jax.random.split(key, 3)

    # symmetric row-normalized-ish adjacency (dense, deterministic)
    adj_raw = jax.random.uniform(k_adj, (N, N), jnp.float32)
    adj = (adj_raw + adj_raw.T) * 0.5
    adj = adj / jnp.sum(adj, axis=1, keepdims=True)

    features = jax.random.normal(k_feat, (N, INPUT_SIZE), jnp.float32)
    params = init_gcn_params(k_params, INPUT_SIZE, OUTPUT_SIZE)

    out = gcn_forward(params, adj, features)
    out = jax.block_until_ready(out)

    # sanity check against plain-JAX f32 reference (original association).
    def ref(params, adj, x):
        w1, b1 = params["gcn1"]; w2, b2 = params["gcn2"]; w3, b3 = params["gcn3"]
        wf1, bf1 = params["fcl1"]; wf2, bf2 = params["fcl2"]
        h = jnp.maximum(adj @ x @ w1.T + b1, 0)
        h = jnp.maximum(adj @ h @ w2.T + b2, 0)
        h = jnp.maximum(adj @ h @ w3.T + b3, 0)
        h = jnp.maximum(h @ wf1.T + bf1, 0)
        return h @ wf2.T + bf2

    expected = ref(params, adj, features)
    assert out.shape == (N, OUTPUT_SIZE)
    # bf16 MXU inputs (f32 accumulation) + reassociation => scaled tolerance.
    err = float(jnp.max(jnp.abs(out - expected)))
    tol = 5e-2 * float(jnp.max(jnp.abs(expected))) + 1e-3
    assert err <= tol, (err, tol)

    print("KERNEL_OK")
</pallas_src>

<mosaic_0001>
module attributes {stable_mosaic.version = 11 : i64} {
  func.func @_gcn_fused_kernel(%arg0: memref<64x64xbf16, #tpu.memory_space<vmem>>, %arg1: memref<64x128xbf16, #tpu.memory_space<vmem>>, %arg2: memref<128x512xbf16, #tpu.memory_space<vmem>>, %arg3: memref<512x128xbf16, #tpu.memory_space<vmem>>, %arg4: memref<256x128xbf16, #tpu.memory_space<vmem>>, %arg5: memref<128x128xbf16, #tpu.memory_space<vmem>>, %arg6: memref<1x1024xf32, #tpu.memory_space<vmem>>, %arg7: memref<64x128xf32, #tpu.memory_space<vmem>>) attributes {dimension_semantics = [], scalar_prefetch = 0 : i64, scratch_operands = 0 : i64, tpu.core_type = #tpu.core_type<tc>} {
    %c0 = arith.constant 0 : index
    %c0_0 = arith.constant 0 : index
    %0 = vector.load %arg0[%c0, %c0_0] : memref<64x64xbf16, #tpu.memory_space<vmem>>, vector<64x64xbf16>
    %c0_1 = arith.constant 0 : index
    %c0_2 = arith.constant 0 : index
    %1 = vector.load %arg6[%c0_1, %c0_2] : memref<1x1024xf32, #tpu.memory_space<vmem>>, vector<1x512xf32>
    %c0_3 = arith.constant 0 : index
    %c512 = arith.constant 512 : index
    %2 = vector.load %arg6[%c0_3, %c512] : memref<1x1024xf32, #tpu.memory_space<vmem>>, vector<1x128xf32>
    %c0_4 = arith.constant 0 : index
    %c640 = arith.constant 640 : index
    %3 = vector.load %arg6[%c0_4, %c640] : memref<1x1024xf32, #tpu.memory_space<vmem>>, vector<1x128xf32>
    %c0_5 = arith.constant 0 : index
    %c768 = arith.constant 768 : index
    %4 = vector.load %arg6[%c0_5, %c768] : memref<1x1024xf32, #tpu.memory_space<vmem>>, vector<1x128xf32>
    %c0_6 = arith.constant 0 : index
    %c896 = arith.constant 896 : index
    %5 = vector.load %arg6[%c0_6, %c896] : memref<1x1024xf32, #tpu.memory_space<vmem>>, vector<1x128xf32>
    %c0_7 = arith.constant 0 : index
    %c0_8 = arith.constant 0 : index
    %6 = vector.load %arg4[%c0_7, %c0_8] : memref<256x128xbf16, #tpu.memory_space<vmem>>, vector<128x128xbf16>
    %c128 = arith.constant 128 : index
    %c0_9 = arith.constant 0 : index
    %7 = vector.load %arg4[%c128, %c0_9] : memref<256x128xbf16, #tpu.memory_space<vmem>>, vector<128x128xbf16>
    %c0_10 = arith.constant 0 : index
    %c0_11 = arith.constant 0 : index
    %8 = vector.load %arg1[%c0_10, %c0_11] : memref<64x128xbf16, #tpu.memory_space<vmem>>, vector<64x128xbf16>
    %cst = arith.constant dense<0.000000e+00> : vector<64x128xf32>
    %9 = tpu.matmul %0, %8, %cst {dimension_numbers = #tpu.dot_dimension_numbers<[1], [0], [0], [1], [0, 0, 1, 1], [], []>} : vector<64x64xbf16>, vector<64x128xbf16>, vector<64x128xf32> -> vector<64x128xf32>
    %10 = arith.truncf %9 : vector<64x128xf32> to vector<64x128xbf16>
    %c0_12 = arith.constant 0 : index
    %c0_13 = arith.constant 0 : index
    %11 = vector.load %arg2[%c0_12, %c0_13] : memref<128x512xbf16, #tpu.memory_space<vmem>>, vector<128x512xbf16>
    %cst_14 = arith.constant dense<0.000000e+00> : vector<64x512xf32>
    %12 = tpu.matmul %10, %11, %cst_14 {dimension_numbers = #tpu.dot_dimension_numbers<[1], [0], [0], [1], [0, 0, 1, 1], [], []>} : vector<64x128xbf16>, vector<128x512xbf16>, vector<64x512xf32> -> vector<64x512xf32>
    %13 = vector.broadcast %1 : vector<1x512xf32> to vector<64x512xf32>
    %14 = arith.addf %12, %13 : vector<64x512xf32>
    %cst_15 = arith.constant 0.000000e+00 : f32
    %15 = vector.broadcast %cst_15 : f32 to vector<64x512xf32>
    %16 = arith.maximumf %14, %15 : vector<64x512xf32>
    %17 = arith.truncf %16 : vector<64x512xf32> to vector<64x512xbf16>
    %c0_16 = arith.constant 0 : index
    %c0_17 = arith.constant 0 : index
    %18 = vector.load %arg3[%c0_16, %c0_17] : memref<512x128xbf16, #tpu.memory_space<vmem>>, vector<512x128xbf16>
    %cst_18 = arith.constant dense<0.000000e+00> : vector<64x128xf32>
    %19 = tpu.matmul %17, %18, %cst_18 {dimension_numbers = #tpu.dot_dimension_numbers<[1], [0], [0], [1], [0, 0, 1, 1], [], []>} : vector<64x512xbf16>, vector<512x128xbf16>, vector<64x128xf32> -> vector<64x128xf32>
    %20 = arith.truncf %19 : vector<64x128xf32> to vector<64x128xbf16>
    %cst_19 = arith.constant dense<0.000000e+00> : vector<64x128xf32>
    %21 = tpu.matmul %0, %20, %cst_19 {dimension_numbers = #tpu.dot_dimension_numbers<[1], [0], [0], [1], [0, 0, 1, 1], [], []>} : vector<64x64xbf16>, vector<64x128xbf16>, vector<64x128xf32> -> vector<64x128xf32>
    %22 = vector.broadcast %2 : vector<1x128xf32> to vector<64x128xf32>
    %23 = arith.addf %21, %22 : vector<64x128xf32>
    %cst_20 = arith.constant 0.000000e+00 : f32
    %24 = vector.broadcast %cst_20 : f32 to vector<64x128xf32>
    %25 = arith.maximumf %23, %24 : vector<64x128xf32>
    %26 = arith.truncf %25 : vector<64x128xf32> to vector<64x128xbf16>
    %cst_21 = arith.constant dense<0.000000e+00> : vector<64x128xf32>
    %27 = tpu.matmul %26, %6, %cst_21 {dimension_numbers = #tpu.dot_dimension_numbers<[1], [0], [0], [1], [0, 0, 1, 1], [], []>} : vector<64x128xbf16>, vector<128x128xbf16>, vector<64x128xf32> -> vector<64x128xf32>
    %28 = arith.truncf %27 : vector<64x128xf32> to vector<64x128xbf16>
    %cst_22 = arith.constant dense<0.000000e+00> : vector<64x128xf32>
    %29 = tpu.matmul %0, %28, %cst_22 {dimension_numbers = #tpu.dot_dimension_numbers<[1], [0], [0], [1], [0, 0, 1, 1], [], []>} : vector<64x64xbf16>, vector<64x128xbf16>, vector<64x128xf32> -> vector<64x128xf32>
    %30 = vector.broadcast %3 : vector<1x128xf32> to vector<64x128xf32>
    %31 = arith.addf %29, %30 : vector<64x128xf32>
    %cst_23 = arith.constant 0.000000e+00 : f32
    %32 = vector.broadcast %cst_23 : f32 to vector<64x128xf32>
    %33 = arith.maximumf %31, %32 : vector<64x128xf32>
    %34 = arith.truncf %33 : vector<64x128xf32> to vector<64x128xbf16>
    %cst_24 = arith.constant dense<0.000000e+00> : vector<64x128xf32>
    %35 = tpu.matmul %34, %7, %cst_24 {dimension_numbers = #tpu.dot_dimension_numbers<[1], [0], [0], [1], [0, 0, 1, 1], [], []>} : vector<64x128xbf16>, vector<128x128xbf16>, vector<64x128xf32> -> vector<64x128xf32>
    %36 = vector.broadcast %4 : vector<1x128xf32> to vector<64x128xf32>
    %37 = arith.addf %35, %36 : vector<64x128xf32>
    %cst_25 = arith.constant 0.000000e+00 : f32
    %38 = vector.broadcast %cst_25 : f32 to vector<64x128xf32>
    %39 = arith.maximumf %37, %38 : vector<64x128xf32>
    %40 = arith.truncf %39 : vector<64x128xf32> to vector<64x128xbf16>
    %c0_26 = arith.constant 0 : index
    %c0_27 = arith.constant 0 : index
    %41 = vector.load %arg5[%c0_26, %c0_27] : memref<128x128xbf16, #tpu.memory_space<vmem>>, vector<128x128xbf16>
    %cst_28 = arith.constant dense<0.000000e+00> : vector<64x128xf32>
    %42 = tpu.matmul %40, %41, %cst_28 {dimension_numbers = #tpu.dot_dimension_numbers<[1], [0], [0], [1], [0, 0, 1, 1], [], []>} : vector<64x128xbf16>, vector<128x128xbf16>, vector<64x128xf32> -> vector<64x128xf32>
    %43 = vector.broadcast %5 : vector<1x128xf32> to vector<64x128xf32>
    %44 = arith.addf %42, %43 : vector<64x128xf32>
    %c0_29 = arith.constant 0 : index
    %c0_30 = arith.constant 0 : index
    %45 = vector.load %arg7[%c0_29, %c0_30] : memref<64x128xf32, #tpu.memory_space<vmem>>, vector<64x128xf32>
    tpu.vector_store %arg7[%c0_29, %c0_30], %44 {strides = array<i32>} : memref<64x128xf32, #tpu.memory_space<vmem>>, vector<64x128xf32>,
    return
  }
}

</mosaic_0001>

<llo_original>
// kernel: custom-call
$region0: #{custom-call}
  %s0 = inlined_call_operand.vmem [shape: f32[1024], index: 0, kind: output, shape index: {}]

// kernel: gcn_forward.1
$region0: #{gcn_forward.1}
  #allocation0 [shape = 'u32[]', space=smem, size = 0x4, offset = 0x4, fixed_abs, tag = 'smem constant byte address 0x4 - core index']
  #allocation1 [shape = 'u32[72,128]{1,0:T(1,128)}', space=vmem, size = 0x9000, scoped, tag = 'internal scratch']
  %s0 = inlined_call_operand.vmem [shape: bf16[64,64], index: 0, kind: input, shape index: {}]
  %s1 = inlined_call_operand.vmem [shape: bf16[64,128], index: 1, kind: input, shape index: {}]
  %s2 = inlined_call_operand.vmem [shape: bf16[128,512], index: 2, kind: input, shape index: {}]
  %s3 = inlined_call_operand.vmem [shape: bf16[512,128], index: 3, kind: input, shape index: {}]
  %s4 = inlined_call_operand.vmem [shape: bf16[256,128], index: 4, kind: input, shape index: {}]
  %s5 = inlined_call_operand.vmem [shape: bf16[128,128], index: 5, kind: input, shape index: {}]
  %s6 = inlined_call_operand.vmem [shape: f32[1,1024], index: 6, kind: input, shape index: {}]
  %s7 = inlined_call_operand.vmem [shape: f32[64,128], index: 7, kind: output, shape index: {}]
  %s8 = sld [smem:[#allocation0]]
  $region38: #{gcn_forward.1} parent=0
    _
  %s10 = ssub.s32 1, %s8
  %s11 = scalar_select 0, %s10, %s8
  // Predicated region
  $region2: #{gcn_forward.1} parent=0 // pred_check
    _
  $region3: #{gcn_forward.1} parent=0 // pred_check_branch
    %13 = sbr.rel (0) target = $region5
  $region4: #{gcn_forward.1} parent=0 // pred_region
    _
  $region5: #{gcn_forward.1} parent=0 // pred_fallthru
    _
  // Predicated region
  $region6: #{gcn_forward.1} parent=0 // pred_check
    _
  $region7: #{gcn_forward.1} parent=0 // pred_check_branch
    %15 = sbr.rel (0) target = $region9
  $region8: #{gcn_forward.1} parent=0 // pred_region
    _
  $region9: #{gcn_forward.1} parent=0 // pred_fallthru
    _
  // Predicated region
  $region10: #{gcn_forward.1} parent=0 // pred_check
    _
  $region11: #{gcn_forward.1} parent=0 // pred_check_branch
    %17 = sbr.rel (0) target = $region13
  $region12: #{gcn_forward.1} parent=0 // pred_region
    _
  $region13: #{gcn_forward.1} parent=0 // pred_fallthru
    _
  // Predicated region
  $region14: #{gcn_forward.1} parent=0 // pred_check
    _
  $region15: #{gcn_forward.1} parent=0 // pred_check_branch
    %19 = sbr.rel (0) target = $region17
  $region16: #{gcn_forward.1} parent=0 // pred_region
    _
  $region17: #{gcn_forward.1} parent=0 // pred_fallthru
    _
  // Predicated region
  $region18: #{gcn_forward.1} parent=0 // pred_check
    _
  $region19: #{gcn_forward.1} parent=0 // pred_check_branch
    %21 = sbr.rel (0) target = $region21
  $region20: #{gcn_forward.1} parent=0 // pred_region
    _
  $region21: #{gcn_forward.1} parent=0 // pred_fallthru
    _
  // Predicated region
  $region22: #{gcn_forward.1} parent=0 // pred_check
    _
  $region23: #{gcn_forward.1} parent=0 // pred_check_branch
    %23 = sbr.rel (0) target = $region25
  $region24: #{gcn_forward.1} parent=0 // pred_region
    _
  $region25: #{gcn_forward.1} parent=0 // pred_fallthru
    _
  // Predicated region
  $region26: #{gcn_forward.1} parent=0 // pred_check
    _
  $region27: #{gcn_forward.1} parent=0 // pred_check_branch
    %25 = sbr.rel (0) target = $region29
  $region28: #{gcn_forward.1} parent=0 // pred_region
    _
  $region29: #{gcn_forward.1} parent=0 // pred_fallthru
    _
  %v27 = vld [vmem:[%s0] sm:$0xf]
  %v28 = vld [vmem:[%s0 + $0x4] sm:$0xf]
  %v29 = vld [vmem:[%s0 + $0x8] sm:$0xf]
  %v30 = vld [vmem:[%s0 + $0xc] sm:$0xf]
  %v31 = vld [vmem:[%s0 + $0x10] sm:$0xf]
  %v32 = vld [vmem:[%s0 + $0x14] sm:$0xf]
  %v33 = vld [vmem:[%s0 + $0x18] sm:$0xf]
  %v34 = vld [vmem:[%s0 + $0x1c] sm:$0xf]
  %v35 = vld [vmem:[%s6] sm:$0xf]
  %v36 = vld [vmem:[%s6 + $0x4] sm:$0x1]
  %v37 = vld [vmem:[%s6 + $0x5] sm:$0x1]
  %v38 = vld [vmem:[%s6 + $0x6] sm:$0x1]
  %v39 = vld [vmem:[%s6 + $0x7] sm:$0x1]
  %v40 = vld [vmem:[%s4] sm:$0xf]
  %v41 = vld [vmem:[%s4 + $0x4] sm:$0xf]
  %v42 = vld [vmem:[%s4 + $0x8] sm:$0xf]
  %v43 = vld [vmem:[%s4 + $0xc] sm:$0xf]
  %v44 = vld [vmem:[%s4 + $0x10] sm:$0xf]
  %v45 = vld [vmem:[%s4 + $0x14] sm:$0xf]
  %v46 = vld [vmem:[%s4 + $0x18] sm:$0xf]
  %v47 = vld [vmem:[%s4 + $0x1c] sm:$0xf]
  %v48 = vld [vmem:[%s4 + $0x20] sm:$0xf]
  %v49 = vld [vmem:[%s4 + $0x24] sm:$0xf]
  %v50 = vld [vmem:[%s4 + $0x28] sm:$0xf]
  %v51 = vld [vmem:[%s4 + $0x2c] sm:$0xf]
  %v52 = vld [vmem:[%s4 + $0x30] sm:$0xf]
  %v53 = vld [vmem:[%s4 + $0x34] sm:$0xf]
  %v54 = vld [vmem:[%s4 + $0x38] sm:$0xf]
  %v55 = vld [vmem:[%s4 + $0x3c] sm:$0xf]
  %v56 = vld [vmem:[%s4 + $0x40] sm:$0xf]
  %v57 = vld [vmem:[%s4 + $0x44] sm:$0xf]
  %v58 = vld [vmem:[%s4 + $0x48] sm:$0xf]
  %v59 = vld [vmem:[%s4 + $0x4c] sm:$0xf]
  %v60 = vld [vmem:[%s4 + $0x50] sm:$0xf]
  %v61 = vld [vmem:[%s4 + $0x54] sm:$0xf]
  %v62 = vld [vmem:[%s4 + $0x58] sm:$0xf]
  %v63 = vld [vmem:[%s4 + $0x5c] sm:$0xf]
  %v64 = vld [vmem:[%s4 + $0x60] sm:$0xf]
  %v65 = vld [vmem:[%s4 + $0x64] sm:$0xf]
  %v66 = vld [vmem:[%s4 + $0x68] sm:$0xf]
  %v67 = vld [vmem:[%s4 + $0x6c] sm:$0xf]
  %v68 = vld [vmem:[%s4 + $0x70] sm:$0xf]
  %v69 = vld [vmem:[%s4 + $0x74] sm:$0xf]
  %v70 = vld [vmem:[%s4 + $0x78] sm:$0xf]
  %v71 = vld [vmem:[%s4 + $0x7c] sm:$0xf]
  %v72 = vld [vmem:[%s1] sm:$0xf]
  %v73 = vld [vmem:[%s1 + $0x4] sm:$0xf]
  %v74 = vld [vmem:[%s1 + $0x8] sm:$0xf]
  %v75 = vld [vmem:[%s1 + $0xc] sm:$0xf]
  %v76 = vld [vmem:[%s1 + $0x10] sm:$0xf]
  %v77 = vld [vmem:[%s1 + $0x14] sm:$0xf]
  %v78 = vld [vmem:[%s1 + $0x18] sm:$0xf]
  %v79 = vld [vmem:[%s1 + $0x1c] sm:$0xf]
  %v88 = vunpack.c.l.b16 %v27
  %v89 = vunpack.c.l.b16 %v28
  %v90 = vunpack.c.l.b16 %v29
  %v91 = vunpack.c.l.b16 %v30
  %v92 = vunpack.c.l.b16 %v31
  %v93 = vunpack.c.l.b16 %v32
  %v94 = vunpack.c.l.b16 %v33
  %v95 = vunpack.c.l.b16 %v34
  %v96 = vpack.c.b16 %v89, %v88
  %v97 = vpack.c.b16 %v91, %v90
  %v98 = vpack.c.b16 %v93, %v92
  %v99 = vpack.c.b16 %v95, %v94
  %v108 = vunpack.c.l.b16 %v72
  %v109 = vunpack.c.l.b16 %v73
  %v110 = vunpack.c.l.b16 %v74
  %v111 = vunpack.c.l.b16 %v75
  %v112 = vunpack.c.l.b16 %v76
  %v113 = vunpack.c.l.b16 %v77
  %v114 = vunpack.c.l.b16 %v78
  %v115 = vunpack.c.l.b16 %v79
  %v116 = vpack.c.b16 %v109, %v108
  %v117 = vpack.c.b16 %v111, %v110
  %v118 = vpack.c.b16 %v113, %v112
  %v119 = vpack.c.b16 %v115, %v114
  %vm124 = vcmask 523264
  %v126 = vsel %vm124, %v96, 0
  %v129 = vsel %vm124, %v97, 0
  %v132 = vsel %vm124, %v98, 0
  %v135 = vsel %vm124, %v99, 0
  %137 = vmatpush.bf16.msra.mxu0 0
  %138 = vmatpush.bf16.msra.mxu0 0
  %139 = vmatpush.bf16.msra.mxu0 0
  %140 = vmatpush.bf16.msra.mxu0 0
  %141 = vmatpush.bf16.msra.mxu0 %v119
  %142 = vmatpush.bf16.msra.mxu0 %v118
  %143 = vmatpush.bf16.msra.mxu0 %v117
  %144 = vmatpush.bf16.msra.mxu0 %v116
  %145 = vmatmul.bf16.gmra.mxu0 %v126
  %v146 = vpop.f32.mrf.mxu0
  %v147 = vadd.f32 0.0, %v146
  %v148 = vpop.f32.mrf.mxu0
  %v149 = vadd.f32 0.0, %v148
  %150 = vmatmul.bf16.gmra.mxu0 %v129
  %v151 = vpop.f32.mrf.mxu0
  %v152 = vadd.f32 0.0, %v151
  %v153 = vpop.f32.mrf.mxu0
  %v154 = vadd.f32 0.0, %v153
  %155 = vmatmul.bf16.gmra.mxu0 %v132
  %v156 = vpop.f32.mrf.mxu0
  %v157 = vadd.f32 0.0, %v156
  %v158 = vpop.f32.mrf.mxu0
  %v159 = vadd.f32 0.0, %v158
  %160 = vmatmul.bf16.gmra.mxu0 %v135
  %v161 = vpop.f32.mrf.mxu0
  %v162 = vadd.f32 0.0, %v161
  %v163 = vpop.f32.mrf.mxu0
  %v164 = vadd.f32 0.0, %v163
  %165 = vdwg.mxu0
  %v166 = vpack.c.bf16 %v149, %v147
  %v167 = vpack.c.bf16 %v154, %v152
  %v168 = vpack.c.bf16 %v159, %v157
  %v169 = vpack.c.bf16 %v164, %v162
  %v170 = vld [vmem:[%s2] sm:$0xff]
  %v171 = vld [vmem:[%s2 + $0x8] sm:$0xff]
  %v172 = vld [vmem:[%s2 + $0x10] sm:$0xff]
  %v173 = vld [vmem:[%s2 + $0x18] sm:$0xff]
  %v174 = vld [vmem:[%s2 + $0x20] sm:$0xff]
  %v175 = vld [vmem:[%s2 + $0x28] sm:$0xff]
  %v176 = vld [vmem:[%s2 + $0x30] sm:$0xff]
  %v177 = vld [vmem:[%s2 + $0x38] sm:$0xff]
  %v178 = vld [vmem:[%s2 + $0x40] sm:$0xff]
  %v179 = vld [vmem:[%s2 + $0x48] sm:$0xff]
  %v180 = vld [vmem:[%s2 + $0x50] sm:$0xff]
  %v181 = vld [vmem:[%s2 + $0x58] sm:$0xff]
  %v182 = vld [vmem:[%s2 + $0x60] sm:$0xff]
  %v183 = vld [vmem:[%s2 + $0x68] sm:$0xff]
  %v184 = vld [vmem:[%s2 + $0x70] sm:$0xff]
  %v185 = vld [vmem:[%s2 + $0x78] sm:$0xff]
  %v186 = vld [vmem:[%s2 + $0x80] sm:$0xff]
  %v187 = vld [vmem:[%s2 + $0x88] sm:$0xff]
  %v188 = vld [vmem:[%s2 + $0x90] sm:$0xff]
  %v189 = vld [vmem:[%s2 + $0x98] sm:$0xff]
  %v190 = vld [vmem:[%s2 + $0xa0] sm:$0xff]
  %v191 = vld [vmem:[%s2 + $0xa8] sm:$0xff]
  %v192 = vld [vmem:[%s2 + $0xb0] sm:$0xff]
  %v193 = vld [vmem:[%s2 + $0xb8] sm:$0xff]
  %v194 = vld [vmem:[%s2 + $0xc0] sm:$0xff]
  %v195 = vld [vmem:[%s2 + $0xc8] sm:$0xff]
  %v196 = vld [vmem:[%s2 + $0xd0] sm:$0xff]
  %v197 = vld [vmem:[%s2 + $0xd8] sm:$0xff]
  %v198 = vld [vmem:[%s2 + $0xe0] sm:$0xff]
  %v199 = vld [vmem:[%s2 + $0xe8] sm:$0xff]
  %v200 = vld [vmem:[%s2 + $0xf0] sm:$0xff]
  %v201 = vld [vmem:[%s2 + $0xf8] sm:$0xff]
  %v203 = vperm.slane %v35, 0
  %v204 = vperm.slane %v35, 1
  %v205 = vperm.slane %v35, 2
  %v206 = vperm.slane %v35, 3
  %v243 = vunpack.c.l.b16 %v170
  %v244 = vunpack.c.h.b16 %v170
  %v245 = vunpack.c.l.b16 %v171
  %v246 = vunpack.c.h.b16 %v171
  %v247 = vunpack.c.l.b16 %v172
  %v248 = vunpack.c.h.b16 %v172
  %v249 = vunpack.c.l.b16 %v173
  %v250 = vunpack.c.h.b16 %v173
  %v251 = vunpack.c.l.b16 %v174
  %v252 = vunpack.c.h.b16 %v174
  %v253 = vunpack.c.l.b16 %v175
  %v254 = vunpack.c.h.b16 %v175
  %v255 = vunpack.c.l.b16 %v176
  %v256 = vunpack.c.h.b16 %v176
  %v257 = vunpack.c.l.b16 %v177
  %v258 = vunpack.c.h.b16 %v177
  %v259 = vunpack.c.l.b16 %v178
  %v260 = vunpack.c.h.b16 %v178
  %v261 = vunpack.c.l.b16 %v179
  %v262 = vunpack.c.h.b16 %v179
  %v263 = vunpack.c.l.b16 %v180
  %v264 = vunpack.c.h.b16 %v180
  %v265 = vunpack.c.l.b16 %v181
  %v266 = vunpack.c.h.b16 %v181
  %v267 = vunpack.c.l.b16 %v182
  %v268 = vunpack.c.h.b16 %v182
  %v269 = vunpack.c.l.b16 %v183
  %v270 = vunpack.c.h.b16 %v183
  %v271 = vunpack.c.l.b16 %v184
  %v272 = vunpack.c.h.b16 %v184
  %v273 = vunpack.c.l.b16 %v185
  %v274 = vunpack.c.h.b16 %v185
  %v275 = vunpack.c.l.b16 %v186
  %v276 = vunpack.c.h.b16 %v186
  %v277 = vunpack.c.l.b16 %v187
  %v278 = vunpack.c.h.b16 %v187
  %v279 = vunpack.c.l.b16 %v188
  %v280 = vunpack.c.h.b16 %v188
  %v281 = vunpack.c.l.b16 %v189
  %v282 = vunpack.c.h.b16 %v189
  %v283 = vunpack.c.l.b16 %v190
  %v284 = vunpack.c.h.b16 %v190
  %v285 = vunpack.c.l.b16 %v191
  %v286 = vunpack.c.h.b16 %v191
  %v287 = vunpack.c.l.b16 %v192
  %v288 = vunpack.c.h.b16 %v192
  %v289 = vunpack.c.l.b16 %v193
  %v290 = vunpack.c.h.b16 %v193
  %v291 = vunpack.c.l.b16 %v194
  %v292 = vunpack.c.h.b16 %v194
  %v293 = vunpack.c.l.b16 %v195
  %v294 = vunpack.c.h.b16 %v195
  %v295 = vunpack.c.l.b16 %v196
  %v296 = vunpack.c.h.b16 %v196
  %v297 = vunpack.c.l.b16 %v197
  %v298 = vunpack.c.h.b16 %v197
  %v299 = vunpack.c.l.b16 %v198
  %v300 = vunpack.c.h.b16 %v198
  %v301 = vunpack.c.l.b16 %v199
  %v302 = vunpack.c.h.b16 %v199
  %v303 = vunpack.c.l.b16 %v200
  %v304 = vunpack.c.h.b16 %v200
  %v305 = vunpack.c.l.b16 %v201
  %v306 = vunpack.c.h.b16 %v201
  %v307 = vpack.c.b16 %v247, %v243
  %v308 = vpack.c.b16 %v248, %v244
  %v309 = vpack.c.b16 %v249, %v245
  %v310 = vpack.c.b16 %v250, %v246
  %v311 = vpack.c.b16 %v255, %v251
  %v312 = vpack.c.b16 %v256, %v252
  %v313 = vpack.c.b16 %v257, %v253
  %v314 = vpack.c.b16 %v258, %v254
  %v315 = vpack.c.b16 %v263, %v259
  %v316 = vpack.c.b16 %v264, %v260
  %v317 = vpack.c.b16 %v265, %v261
  %v318 = vpack.c.b16 %v266, %v262
  %v319 = vpack.c.b16 %v271, %v267
  %v320 = vpack.c.b16 %v272, %v268
  %v321 = vpack.c.b16 %v273, %v269
  %v322 = vpack.c.b16 %v274, %v270
  %v323 = vpack.c.b16 %v279, %v275
  %v324 = vpack.c.b16 %v280, %v276
  %v325 = vpack.c.b16 %v281, %v277
  %v326 = vpack.c.b16 %v282, %v278
  %v327 = vpack.c.b16 %v287, %v283
  %v328 = vpack.c.b16 %v288, %v284
  %v329 = vpack.c.b16 %v289, %v285
  %v330 = vpack.c.b16 %v290, %v286
  %v331 = vpack.c.b16 %v295, %v291
  %v332 = vpack.c.b16 %v296, %v292
  %v333 = vpack.c.b16 %v297, %v293
  %v334 = vpack.c.b16 %v298, %v294
  %v335 = vpack.c.b16 %v303, %v299
  %v336 = vpack.c.b16 %v304, %v300
  %v337 = vpack.c.b16 %v305, %v301
  %v338 = vpack.c.b16 %v306, %v302
  %371 = vmatpush.bf16.msra.mxu0 %v335
  %372 = vmatpush.bf16.msra.mxu0 %v331
  %373 = vmatpush.bf16.msra.mxu0 %v327
  %374 = vmatpush.bf16.msra.mxu0 %v323
  %375 = vmatpush.bf16.msra.mxu0 %v319
  %376 = vmatpush.bf16.msra.mxu0 %v315
  %377 = vmatpush.bf16.msra.mxu0 %v311
  %378 = vmatpush.bf16.msra.mxu0 %v307
  %379 = vmatmul.bf16.gmra.mxu0 %v166
  %v380 = vpop.f32.mrf.mxu0
  %v381 = vadd.f32 %v203, %v380
  %v382 = vpop.f32.mrf.mxu0
  %v383 = vadd.f32 %v203, %v382
  %384 = vmatmul.bf16.gmra.mxu0 %v167
  %v385 = vpop.f32.mrf.mxu0
  %v386 = vadd.f32 %v203, %v385
  %v387 = vpop.f32.mrf.mxu0
  %v388 = vadd.f32 %v203, %v387
  %389 = vmatmul.bf16.gmra.mxu0 %v168
  %v390 = vpop.f32.mrf.mxu0
  %v391 = vadd.f32 %v203, %v390
  %v392 = vpop.f32.mrf.mxu0
  %v393 = vadd.f32 %v203, %v392
  %394 = vmatmul.bf16.gmra.mxu0 %v169
  %v395 = vpop.f32.mrf.mxu0
  %v396 = vadd.f32 %v203, %v395
  %v397 = vpop.f32.mrf.mxu0
  %v398 = vadd.f32 %v203, %v397
  %399 = vdwg.mxu0
  %400 = vmatpush.bf16.msra.mxu0 %v336
  %401 = vmatpush.bf16.msra.mxu0 %v332
  %402 = vmatpush.bf16.msra.mxu0 %v328
  %403 = vmatpush.bf16.msra.mxu0 %v324
  %404 = vmatpush.bf16.msra.mxu0 %v320
  %405 = vmatpush.bf16.msra.mxu0 %v316
  %406 = vmatpush.bf16.msra.mxu0 %v312
  %407 = vmatpush.bf16.msra.mxu0 %v308
  %408 = vmatmul.bf16.gmra.mxu0 %v166
  %v409 = vpop.f32.mrf.mxu0
  %v410 = vadd.f32 %v204, %v409
  %v411 = vpop.f32.mrf.mxu0
  %v412 = vadd.f32 %v204, %v411
  %413 = vmatmul.bf16.gmra.mxu0 %v167
  %v414 = vpop.f32.mrf.mxu0
  %v415 = vadd.f32 %v204, %v414
  %v416 = vpop.f32.mrf.mxu0
  %v417 = vadd.f32 %v204, %v416
  %418 = vmatmul.bf16.gmra.mxu0 %v168
  %v419 = vpop.f32.mrf.mxu0
  %v420 = vadd.f32 %v204, %v419
  %v421 = vpop.f32.mrf.mxu0
  %v422 = vadd.f32 %v204, %v421
  %423 = vmatmul.bf16.gmra.mxu0 %v169
  %v424 = vpop.f32.mrf.mxu0
  %v425 = vadd.f32 %v204, %v424
  %v426 = vpop.f32.mrf.mxu0
  %v427 = vadd.f32 %v204, %v426
  %428 = vdwg.mxu0
  %429 = vmatpush.bf16.msra.mxu0 %v337
  %430 = vmatpush.bf16.msra.mxu0 %v333
  %431 = vmatpush.bf16.msra.mxu0 %v329
  %432 = vmatpush.bf16.msra.mxu0 %v325
  %433 = vmatpush.bf16.msra.mxu0 %v321
  %434 = vmatpush.bf16.msra.mxu0 %v317
  %435 = vmatpush.bf16.msra.mxu0 %v313
  %436 = vmatpush.bf16.msra.mxu0 %v309
  %437 = vmatmul.bf16.gmra.mxu0 %v166
  %v438 = vpop.f32.mrf.mxu0
  %v439 = vadd.f32 %v205, %v438
  %v440 = vpop.f32.mrf.mxu0
  %v441 = vadd.f32 %v205, %v440
  %442 = vmatmul.bf16.gmra.mxu0 %v167
  %v443 = vpop.f32.mrf.mxu0
  %v444 = vadd.f32 %v205, %v443
  %v445 = vpop.f32.mrf.mxu0
  %v446 = vadd.f32 %v205, %v445
  %447 = vmatmul.bf16.gmra.mxu0 %v168
  %v448 = vpop.f32.mrf.mxu0
  %v449 = vadd.f32 %v205, %v448
  %v450 = vpop.f32.mrf.mxu0
  %v451 = vadd.f32 %v205, %v450
  %452 = vmatmul.bf16.gmra.mxu0 %v169
  %v453 = vpop.f32.mrf.mxu0
  %v454 = vadd.f32 %v205, %v453
  %v455 = vpop.f32.mrf.mxu0
  %v456 = vadd.f32 %v205, %v455
  %457 = vdwg.mxu0
  %458 = vmatpush.bf16.msra.mxu0 %v338
  %459 = vmatpush.bf16.msra.mxu0 %v334
  %460 = vmatpush.bf16.msra.mxu0 %v330
  %461 = vmatpush.bf16.msra.mxu0 %v326
  %462 = vmatpush.bf16.msra.mxu0 %v322
  %463 = vmatpush.bf16.msra.mxu0 %v318
  %464 = vmatpush.bf16.msra.mxu0 %v314
  %465 = vmatpush.bf16.msra.mxu0 %v310
  %466 = vmatmul.bf16.gmra.mxu0 %v166
  %v467 = vpop.f32.mrf.mxu0
  %v468 = vadd.f32 %v206, %v467
  %v469 = vpop.f32.mrf.mxu0
  %v470 = vadd.f32 %v206, %v469
  %471 = vmatmul.bf16.gmra.mxu0 %v167
  %v472 = vpop.f32.mrf.mxu0
  %v473 = vadd.f32 %v206, %v472
  %v474 = vpop.f32.mrf.mxu0
  %v475 = vadd.f32 %v206, %v474
  %476 = vmatmul.bf16.gmra.mxu0 %v168
  %v477 = vpop.f32.mrf.mxu0
  %v478 = vadd.f32 %v206, %v477
  %v479 = vpop.f32.mrf.mxu0
  %v480 = vadd.f32 %v206, %v479
  %481 = vmatmul.bf16.gmra.mxu0 %v169
  %v482 = vpop.f32.mrf.mxu0
  %v483 = vadd.f32 %v206, %v482
  %v484 = vpop.f32.mrf.mxu0
  %v485 = vadd.f32 %v206, %v484
  %486 = vdwg.mxu0
  %v487 = vmax.f32 %v381, 0.0
  %v488 = vmax.f32 %v410, 0.0
  %v489 = vmax.f32 %v439, 0.0
  %v490 = vmax.f32 %v468, 0.0
  %v491 = vmax.f32 %v383, 0.0
  %v492 = vmax.f32 %v412, 0.0
  %v493 = vmax.f32 %v441, 0.0
  %v494 = vmax.f32 %v470, 0.0
  %v495 = vmax.f32 %v386, 0.0
  %v496 = vmax.f32 %v415, 0.0
  %v497 = vmax.f32 %v444, 0.0
  %v498 = vmax.f32 %v473, 0.0
  %v499 = vmax.f32 %v388, 0.0
  %v500 = vmax.f32 %v417, 0.0
  %v501 = vmax.f32 %v446, 0.0
  %v502 = vmax.f32 %v475, 0.0
  %v503 = vmax.f32 %v391, 0.0
  %v504 = vmax.f32 %v420, 0.0
  %v505 = vmax.f32 %v449, 0.0
  %v506 = vmax.f32 %v478, 0.0
  %v507 = vmax.f32 %v393, 0.0
  %v508 = vmax.f32 %v422, 0.0
  %v509 = vmax.f32 %v451, 0.0
  %v510 = vmax.f32 %v480, 0.0
  %v511 = vmax.f32 %v396, 0.0
  %v512 = vmax.f32 %v425, 0.0
  %v513 = vmax.f32 %v454, 0.0
  %v514 = vmax.f32 %v483, 0.0
  %v515 = vmax.f32 %v398, 0.0
  %v516 = vmax.f32 %v427, 0.0
  %v517 = vmax.f32 %v456, 0.0
  %v518 = vmax.f32 %v485, 0.0
  %v519 = vpack.c.bf16 %v491, %v487
  %v520 = vpack.c.bf16 %v492, %v488
  %v521 = vpack.c.bf16 %v493, %v489
  %v522 = vpack.c.bf16 %v494, %v490
  %v523 = vpack.c.bf16 %v499, %v495
  %v524 = vpack.c.bf16 %v500, %v496
  %v525 = vpack.c.bf16 %v501, %v497
  %v526 = vpack.c.bf16 %v502, %v498
  %v527 = vpack.c.bf16 %v507, %v503
  %v528 = vpack.c.bf16 %v508, %v504
  %v529 = vpack.c.bf16 %v509, %v505
  %v530 = vpack.c.bf16 %v510, %v506
  %v531 = vpack.c.bf16 %v515, %v511
  %v532 = vpack.c.bf16 %v516, %v512
  %v533 = vpack.c.bf16 %v517, %v513
  %v534 = vpack.c.bf16 %v518, %v514
  %v535 = vld [vmem:[%s3] sm:$0xf]
  %v536 = vld [vmem:[%s3 + $0x4] sm:$0xf]
  %v537 = vld [vmem:[%s3 + $0x8] sm:$0xf]
  %v538 = vld [vmem:[%s3 + $0xc] sm:$0xf]
  %v539 = vld [vmem:[%s3 + $0x10] sm:$0xf]
  %v540 = vld [vmem:[%s3 + $0x14] sm:$0xf]
  %v541 = vld [vmem:[%s3 + $0x18] sm:$0xf]
  %v542 = vld [vmem:[%s3 + $0x1c] sm:$0xf]
  %v543 = vld [vmem:[%s3 + $0x20] sm:$0xf]
  %v544 = vld [vmem:[%s3 + $0x24] sm:$0xf]
  %v545 = vld [vmem:[%s3 + $0x28] sm:$0xf]
  %v546 = vld [vmem:[%s3 + $0x2c] sm:$0xf]
  %v547 = vld [vmem:[%s3 + $0x30] sm:$0xf]
  %v548 = vld [vmem:[%s3 + $0x34] sm:$0xf]
  %v549 = vld [vmem:[%s3 + $0x38] sm:$0xf]
  %v550 = vld [vmem:[%s3 + $0x3c] sm:$0xf]
  %v551 = vld [vmem:[%s3 + $0x40] sm:$0xf]
  %v552 = vld [vmem:[%s3 + $0x44] sm:$0xf]
  %v553 = vld [vmem:[%s3 + $0x48] sm:$0xf]
  %v554 = vld [vmem:[%s3 + $0x4c] sm:$0xf]
  %v555 = vld [vmem:[%s3 + $0x50] sm:$0xf]
  %v556 = vld [vmem:[%s3 + $0x54] sm:$0xf]
  %v557 = vld [vmem:[%s3 + $0x58] sm:$0xf]
  %v558 = vld [vmem:[%s3 + $0x5c] sm:$0xf]
  %v559 = vld [vmem:[%s3 + $0x60] sm:$0xf]
  %v560 = vld [vmem:[%s3 + $0x64] sm:$0xf]
  %v561 = vld [vmem:[%s3 + $0x68] sm:$0xf]
  %v562 = vld [vmem:[%s3 + $0x6c] sm:$0xf]
  %v563 = vld [vmem:[%s3 + $0x70] sm:$0xf]
  %v564 = vld [vmem:[%s3 + $0x74] sm:$0xf]
  %v565 = vld [vmem:[%s3 + $0x78] sm:$0xf]
  %v566 = vld [vmem:[%s3 + $0x7c] sm:$0xf]
  %v567 = vld [vmem:[%s3 + $0x80] sm:$0xf]
  %v568 = vld [vmem:[%s3 + $0x84] sm:$0xf]
  %v569 = vld [vmem:[%s3 + $0x88] sm:$0xf]
  %v570 = vld [vmem:[%s3 + $0x8c] sm:$0xf]
  %v571 = vld [vmem:[%s3 + $0x90] sm:$0xf]
  %v572 = vld [vmem:[%s3 + $0x94] sm:$0xf]
  %v573 = vld [vmem:[%s3 + $0x98] sm:$0xf]
  %v574 = vld [vmem:[%s3 + $0x9c] sm:$0xf]
  %v575 = vld [vmem:[%s3 + $0xa0] sm:$0xf]
  %v576 = vld [vmem:[%s3 + $0xa4] sm:$0xf]
  %v577 = vld [vmem:[%s3 + $0xa8] sm:$0xf]
  %v578 = vld [vmem:[%s3 + $0xac] sm:$0xf]
  %v579 = vld [vmem:[%s3 + $0xb0] sm:$0xf]
  %v580 = vld [vmem:[%s3 + $0xb4] sm:$0xf]
  %v581 = vld [vmem:[%s3 + $0xb8] sm:$0xf]
  %v582 = vld [vmem:[%s3 + $0xbc] sm:$0xf]
  %v583 = vld [vmem:[%s3 + $0xc0] sm:$0xf]
  %v584 = vld [vmem:[%s3 + $0xc4] sm:$0xf]
  %v585 = vld [vmem:[%s3 + $0xc8] sm:$0xf]
  %v586 = vld [vmem:[%s3 + $0xcc] sm:$0xf]
  %v587 = vld [vmem:[%s3 + $0xd0] sm:$0xf]
  %v588 = vld [vmem:[%s3 + $0xd4] sm:$0xf]
  %v589 = vld [vmem:[%s3 + $0xd8] sm:$0xf]
  %v590 = vld [vmem:[%s3 + $0xdc] sm:$0xf]
  %v591 = vld [vmem:[%s3 + $0xe0] sm:$0xf]
  %v592 = vld [vmem:[%s3 + $0xe4] sm:$0xf]
  %v593 = vld [vmem:[%s3 + $0xe8] sm:$0xf]
  %v594 = vld [vmem:[%s3 + $0xec] sm:$0xf]
  %v595 = vld [vmem:[%s3 + $0xf0] sm:$0xf]
  %v596 = vld [vmem:[%s3 + $0xf4] sm:$0xf]
  %v597 = vld [vmem:[%s3 + $0xf8] sm:$0xf]
  %v598 = vld [vmem:[%s3 + $0xfc] sm:$0xf]
  %v663 = vunpack.c.l.b16 %v535
  %v664 = vunpack.c.l.b16 %v536
  %v665 = vunpack.c.l.b16 %v537
  %v666 = vunpack.c.l.b16 %v538
  %v667 = vunpack.c.l.b16 %v539
  %v668 = vunpack.c.l.b16 %v540
  %v669 = vunpack.c.l.b16 %v541
  %v670 = vunpack.c.l.b16 %v542
  %v671 = vunpack.c.l.b16 %v543
  %v672 = vunpack.c.l.b16 %v544
  %v673 = vunpack.c.l.b16 %v545
  %v674 = vunpack.c.l.b16 %v546
  %v675 = vunpack.c.l.b16 %v547
  %v676 = vunpack.c.l.b16 %v548
  %v677 = vunpack.c.l.b16 %v549
  %v678 = vunpack.c.l.b16 %v550
  %v679 = vunpack.c.l.b16 %v551
  %v680 = vunpack.c.l.b16 %v552
  %v681 = vunpack.c.l.b16 %v553
  %v682 = vunpack.c.l.b16 %v554
  %v683 = vunpack.c.l.b16 %v555
  %v684 = vunpack.c.l.b16 %v556
  %v685 = vunpack.c.l.b16 %v557
  %v686 = vunpack.c.l.b16 %v558
  %v687 = vunpack.c.l.b16 %v559
  %v688 = vunpack.c.l.b16 %v560
  %v689 = vunpack.c.l.b16 %v561
  %v690 = vunpack.c.l.b16 %v562
  %v691 = vunpack.c.l.b16 %v563
  %v692 = vunpack.c.l.b16 %v564
  %v693 = vunpack.c.l.b16 %v565
  %v694 = vunpack.c.l.b16 %v566
  %v695 = vunpack.c.l.b16 %v567
  %v696 = vunpack.c.l.b16 %v568
  %v697 = vunpack.c.l.b16 %v569
  %v698 = vunpack.c.l.b16 %v570
  %v699 = vunpack.c.l.b16 %v571
  %v700 = vunpack.c.l.b16 %v572
  %v701 = vunpack.c.l.b16 %v573
  %v702 = vunpack.c.l.b16 %v574
  %v703 = vunpack.c.l.b16 %v575
  %v704 = vunpack.c.l.b16 %v576
  %v705 = vunpack.c.l.b16 %v577
  %v706 = vunpack.c.l.b16 %v578
  %v707 = vunpack.c.l.b16 %v579
  %v708 = vunpack.c.l.b16 %v580
  %v709 = vunpack.c.l.b16 %v581
  %v710 = vunpack.c.l.b16 %v582
  %v711 = vunpack.c.l.b16 %v583
  %v712 = vunpack.c.l.b16 %v584
  %v713 = vunpack.c.l.b16 %v585
  %v714 = vunpack.c.l.b16 %v586
  %v715 = vunpack.c.l.b16 %v587
  %v716 = vunpack.c.l.b16 %v588
  %v717 = vunpack.c.l.b16 %v589
  %v718 = vunpack.c.l.b16 %v590
  %v719 = vunpack.c.l.b16 %v591
  %v720 = vunpack.c.l.b16 %v592
  %v721 = vunpack.c.l.b16 %v593
  %v722 = vunpack.c.l.b16 %v594
  %v723 = vunpack.c.l.b16 %v595
  %v724 = vunpack.c.l.b16 %v596
  %v725 = vunpack.c.l.b16 %v597
  %v726 = vunpack.c.l.b16 %v598
  %v727 = vpack.c.b16 %v664, %v663
  %v728 = vpack.c.b16 %v666, %v665
  %v729 = vpack.c.b16 %v668, %v667
  %v730 = vpack.c.b16 %v670, %v669
  %v731 = vpack.c.b16 %v672, %v671
  %v732 = vpack.c.b16 %v674, %v673
  %v733 = vpack.c.b16 %v676, %v675
  %v734 = vpack.c.b16 %v678, %v677
  %v735 = vpack.c.b16 %v680, %v679
  %v736 = vpack.c.b16 %v682, %v681
  %v737 = vpack.c.b16 %v684, %v683
  %v738 = vpack.c.b16 %v686, %v685
  %v739 = vpack.c.b16 %v688, %v687
  %v740 = vpack.c.b16 %v690, %v689
  %v741 = vpack.c.b16 %v692, %v691
  %v742 = vpack.c.b16 %v694, %v693
  %v743 = vpack.c.b16 %v696, %v695
  %v744 = vpack.c.b16 %v698, %v697
  %v745 = vpack.c.b16 %v700, %v699
  %v746 = vpack.c.b16 %v702, %v701
  %v747 = vpack.c.b16 %v704, %v703
  %v748 = vpack.c.b16 %v706, %v705
  %v749 = vpack.c.b16 %v708, %v707
  %v750 = vpack.c.b16 %v710, %v709
  %v751 = vpack.c.b16 %v712, %v711
  %v752 = vpack.c.b16 %v714, %v713
  %v753 = vpack.c.b16 %v716, %v715
  %v754 = vpack.c.b16 %v718, %v717
  %v755 = vpack.c.b16 %v720, %v719
  %v756 = vpack.c.b16 %v722, %v721
  %v757 = vpack.c.b16 %v724, %v723
  %v758 = vpack.c.b16 %v726, %v725
  %791 = vmatpush.bf16.msra.mxu0 %v734
  %792 = vmatpush.bf16.msra.mxu0 %v733
  %793 = vmatpush.bf16.msra.mxu0 %v732
  %794 = vmatpush.bf16.msra.mxu0 %v731
  %795 = vmatpush.bf16.msra.mxu0 %v730
  %796 = vmatpush.bf16.msra.mxu0 %v729
  %797 = vmatpush.bf16.msra.mxu0 %v728
  %798 = vmatpush.bf16.msra.mxu0 %v727
  %799 = vmatmul.bf16.gmra.mxu0 %v519
  %v800 = vpop.f32.mrf.mxu0
  %v801 = vadd.f32 0.0, %v800
  %v802 = vpop.f32.mrf.mxu0
  %v803 = vadd.f32 0.0, %v802
  %804 = vmatmul.bf16.gmra.mxu0 %v523
  %v805 = vpop.f32.mrf.mxu0
  %v806 = vadd.f32 0.0, %v805
  %v807 = vpop.f32.mrf.mxu0
  %v808 = vadd.f32 0.0, %v807
  %809 = vmatmul.bf16.gmra.mxu0 %v527
  %v810 = vpop.f32.mrf.mxu0
  %v811 = vadd.f32 0.0, %v810
  %v812 = vpop.f32.mrf.mxu0
  %v813 = vadd.f32 0.0, %v812
  %814 = vmatmul.bf16.gmra.mxu0 %v531
  %v815 = vpop.f32.mrf.mxu0
  %v816 = vadd.f32 0.0, %v815
  %v817 = vpop.f32.mrf.mxu0
  %v818 = vadd.f32 0.0, %v817
  %819 = vdwg.mxu0
  %820 = vmatpush.bf16.msra.mxu0 %v742
  %821 = vmatpush.bf16.msra.mxu0 %v741
  %822 = vmatpush.bf16.msra.mxu0 %v740
  %823 = vmatpush.bf16.msra.mxu0 %v739
  %824 = vmatpush.bf16.msra.mxu0 %v738
  %825 = vmatpush.bf16.msra.mxu0 %v737
  %826 = vmatpush.bf16.msra.mxu0 %v736
  %827 = vmatpush.bf16.msra.mxu0 %v735
  %828 = vmatmul.bf16.gmra.mxu0 %v520
  %v829 = vpop.f32.mrf.mxu0
  %v830 = vadd.f32 %v801, %v829
  %v831 = vpop.f32.mrf.mxu0
  %v832 = vadd.f32 %v803, %v831
  %833 = vmatmul.bf16.gmra.mxu0 %v524
  %v834 = vpop.f32.mrf.mxu0
  %v835 = vadd.f32 %v806, %v834
  %v836 = vpop.f32.mrf.mxu0
  %v837 = vadd.f32 %v808, %v836
  %838 = vmatmul.bf16.gmra.mxu0 %v528
  %v839 = vpop.f32.mrf.mxu0
  %v840 = vadd.f32 %v811, %v839
  %v841 = vpop.f32.mrf.mxu0
  %v842 = vadd.f32 %v813, %v841
  %843 = vmatmul.bf16.gmra.mxu0 %v532
  %v844 = vpop.f32.mrf.mxu0
  %v845 = vadd.f32 %v816, %v844
  %v846 = vpop.f32.mrf.mxu0
  %v847 = vadd.f32 %v818, %v846
  %848 = vdwg.mxu0
  %849 = vmatpush.bf16.msra.mxu0 %v750
  %850 = vmatpush.bf16.msra.mxu0 %v749
  %851 = vmatpush.bf16.msra.mxu0 %v748
  %852 = vmatpush.bf16.msra.mxu0 %v747
  %853 = vmatpush.bf16.msra.mxu0 %v746
  %854 = vmatpush.bf16.msra.mxu0 %v745
  %855 = vmatpush.bf16.msra.mxu0 %v744
  %856 = vmatpush.bf16.msra.mxu0 %v743
  %857 = vmatmul.bf16.gmra.mxu0 %v521
  %v858 = vpop.f32.mrf.mxu0
  %v859 = vadd.f32 %v830, %v858
  %v860 = vpop.f32.mrf.mxu0
  %v861 = vadd.f32 %v832, %v860
  %862 = vmatmul.bf16.gmra.mxu0 %v525
  %v863 = vpop.f32.mrf.mxu0
  %v864 = vadd.f32 %v835, %v863
  %v865 = vpop.f32.mrf.mxu0
  %v866 = vadd.f32 %v837, %v865
  %867 = vmatmul.bf16.gmra.mxu0 %v529
  %v868 = vpop.f32.mrf.mxu0
  %v869 = vadd.f32 %v840, %v868
  %v870 = vpop.f32.mrf.mxu0
  %v871 = vadd.f32 %v842, %v870
  %872 = vmatmul.bf16.gmra.mxu0 %v533
  %v873 = vpop.f32.mrf.mxu0
  %v874 = vadd.f32 %v845, %v873
  %v875 = vpop.f32.mrf.mxu0
  %v876 = vadd.f32 %v847, %v875
  %877 = vdwg.mxu0
  %878 = vmatpush.bf16.msra.mxu0 %v758
  %879 = vmatpush.bf16.msra.mxu0 %v757
  %880 = vmatpush.bf16.msra.mxu0 %v756
  %881 = vmatpush.bf16.msra.mxu0 %v755
  %882 = vmatpush.bf16.msra.mxu0 %v754
  %883 = vmatpush.bf16.msra.mxu0 %v753
  %884 = vmatpush.bf16.msra.mxu0 %v752
  %885 = vmatpush.bf16.msra.mxu0 %v751
  %886 = vmatmul.bf16.gmra.mxu0 %v522
  %v887 = vpop.f32.mrf.mxu0
  %v888 = vadd.f32 %v859, %v887
  %v889 = vpop.f32.mrf.mxu0
  %v890 = vadd.f32 %v861, %v889
  %891 = vmatmul.bf16.gmra.mxu0 %v526
  %v892 = vpop.f32.mrf.mxu0
  %v893 = vadd.f32 %v864, %v892
  %v894 = vpop.f32.mrf.mxu0
  %v895 = vadd.f32 %v866, %v894
  %896 = vmatmul.bf16.gmra.mxu0 %v530
  %v897 = vpop.f32.mrf.mxu0
  %v898 = vadd.f32 %v869, %v897
  %v899 = vpop.f32.mrf.mxu0
  %v900 = vadd.f32 %v871, %v899
  %901 = vmatmul.bf16.gmra.mxu0 %v534
  %v902 = vpop.f32.mrf.mxu0
  %v903 = vadd.f32 %v874, %v902
  %v904 = vpop.f32.mrf.mxu0
  %v905 = vadd.f32 %v876, %v904
  %906 = vdwg.mxu0
  %v907 = vpack.c.bf16 %v890, %v888
  %v908 = vpack.c.bf16 %v895, %v893
  %v909 = vpack.c.bf16 %v900, %v898
  %v910 = vpack.c.bf16 %v905, %v903
  %v912 = vperm.slane %v36, 0
  %914 = vmatpush.bf16.msra.mxu0 0
  %915 = vmatpush.bf16.msra.mxu0 0
  %916 = vmatpush.bf16.msra.mxu0 0
  %917 = vmatpush.bf16.msra.mxu0 0
  %918 = vmatpush.bf16.msra.mxu0 %v910
  %919 = vmatpush.bf16.msra.mxu0 %v909
  %920 = vmatpush.bf16.msra.mxu0 %v908
  %921 = vmatpush.bf16.msra.mxu0 %v907
  %922 = vmatmul.bf16.gmra.mxu0 %v126
  %v923 = vpop.f32.mrf.mxu0
  %v924 = vadd.f32 %v912, %v923
  %v925 = vpop.f32.mrf.mxu0
  %v926 = vadd.f32 %v912, %v925
  %927 = vmatmul.bf16.gmra.mxu0 %v129
  %v928 = vpop.f32.mrf.mxu0
  %v929 = vadd.f32 %v912, %v928
  %v930 = vpop.f32.mrf.mxu0
  %v931 = vadd.f32 %v912, %v930
  %932 = vmatmul.bf16.gmra.mxu0 %v132
  %v933 = vpop.f32.mrf.mxu0
  %v934 = vadd.f32 %v912, %v933
  %v935 = vpop.f32.mrf.mxu0
  %v936 = vadd.f32 %v912, %v935
  %937 = vmatmul.bf16.gmra.mxu0 %v135
  %v938 = vpop.f32.mrf.mxu0
  %v939 = vadd.f32 %v912, %v938
  %v940 = vpop.f32.mrf.mxu0
  %v941 = vadd.f32 %v912, %v940
  %942 = vdwg.mxu0
  %v943 = vmax.f32 %v924, 0.0
  %v944 = vmax.f32 %v926, 0.0
  %v945 = vmax.f32 %v929, 0.0
  %v946 = vmax.f32 %v931, 0.0
  %v947 = vmax.f32 %v934, 0.0
  %v948 = vmax.f32 %v936, 0.0
  %v949 = vmax.f32 %v939, 0.0
  %v950 = vmax.f32 %v941, 0.0
  %v951 = vpack.c.bf16 %v944, %v943
  %v952 = vpack.c.bf16 %v946, %v945
  %v953 = vpack.c.bf16 %v948, %v947
  %v954 = vpack.c.bf16 %v950, %v949
  %v971 = vunpack.c.l.b16 %v40
  %v972 = vunpack.c.l.b16 %v41
  %v973 = vunpack.c.l.b16 %v42
  %v974 = vunpack.c.l.b16 %v43
  %v975 = vunpack.c.l.b16 %v44
  %v976 = vunpack.c.l.b16 %v45
  %v977 = vunpack.c.l.b16 %v46
  %v978 = vunpack.c.l.b16 %v47
  %v979 = vunpack.c.l.b16 %v48
  %v980 = vunpack.c.l.b16 %v49
  %v981 = vunpack.c.l.b16 %v50
  %v982 = vunpack.c.l.b16 %v51
  %v983 = vunpack.c.l.b16 %v52
  %v984 = vunpack.c.l.b16 %v53
  %v985 = vunpack.c.l.b16 %v54
  %v986 = vunpack.c.l.b16 %v55
  %v987 = vpack.c.b16 %v972, %v971
  %v988 = vpack.c.b16 %v974, %v973
  %v989 = vpack.c.b16 %v976, %v975
  %v990 = vpack.c.b16 %v978, %v977
  %v991 = vpack.c.b16 %v980, %v979
  %v992 = vpack.c.b16 %v982, %v981
  %v993 = vpack.c.b16 %v984, %v983
  %v994 = vpack.c.b16 %v986, %v985
  %1003 = vmatpush.bf16.msra.mxu0 %v994
  %1004 = vmatpush.bf16.msra.mxu0 %v993
  %1005 = vmatpush.bf16.msra.mxu0 %v992
  %1006 = vmatpush.bf16.msra.mxu0 %v991
  %1007 = vmatpush.bf16.msra.mxu0 %v990
  %1008 = vmatpush.bf16.msra.mxu0 %v989
  %1009 = vmatpush.bf16.msra.mxu0 %v988
  %1010 = vmatpush.bf16.msra.mxu0 %v987
  %1011 = vmatmul.bf16.gmra.mxu0 %v951
  %v1012 = vpop.f32.mrf.mxu0
  %v1013 = vadd.f32 0.0, %v1012
  %v1014 = vpop.f32.mrf.mxu0
  %v1015 = vadd.f32 0.0, %v1014
  %1016 = vmatmul.bf16.gmra.mxu0 %v952
  %v1017 = vpop.f32.mrf.mxu0
  %v1018 = vadd.f32 0.0, %v1017
  %v1019 = vpop.f32.mrf.mxu0
  %v1020 = vadd.f32 0.0, %v1019
  %1021 = vmatmul.bf16.gmra.mxu0 %v953
  %v1022 = vpop.f32.mrf.mxu0
  %v1023 = vadd.f32 0.0, %v1022
  %v1024 = vpop.f32.mrf.mxu0
  %v1025 = vadd.f32 0.0, %v1024
  %1026 = vmatmul.bf16.gmra.mxu0 %v954
  %v1027 = vpop.f32.mrf.mxu0
  %v1028 = vadd.f32 0.0, %v1027
  %v1029 = vpop.f32.mrf.mxu0
  %v1030 = vadd.f32 0.0, %v1029
  %1031 = vdwg.mxu0
  %v1032 = vpack.c.bf16 %v1015, %v1013
  %v1033 = vpack.c.bf16 %v1020, %v1018
  %v1034 = vpack.c.bf16 %v1025, %v1023
  %v1035 = vpack.c.bf16 %v1030, %v1028
  %v1037 = vperm.slane %v37, 0
  %1039 = vmatpush.bf16.msra.mxu0 0
  %1040 = vmatpush.bf16.msra.mxu0 0
  %1041 = vmatpush.bf16.msra.mxu0 0
  %1042 = vmatpush.bf16.msra.mxu0 0
  %1043 = vmatpush.bf16.msra.mxu0 %v1035
  %1044 = vmatpush.bf16.msra.mxu0 %v1034
  %1045 = vmatpush.bf16.msra.mxu0 %v1033
  %1046 = vmatpush.bf16.msra.mxu0 %v1032
  %1047 = vmatmul.bf16.gmra.mxu0 %v126
  %v1048 = vpop.f32.mrf.mxu0
  %v1049 = vadd.f32 %v1037, %v1048
  %v1050 = vpop.f32.mrf.mxu0
  %v1051 = vadd.f32 %v1037, %v1050
  %1052 = vmatmul.bf16.gmra.mxu0 %v129
  %v1053 = vpop.f32.mrf.mxu0
  %v1054 = vadd.f32 %v1037, %v1053
  %v1055 = vpop.f32.mrf.mxu0
  %v1056 = vadd.f32 %v1037, %v1055
  %1057 = vmatmul.bf16.gmra.mxu0 %v132
  %v1058 = vpop.f32.mrf.mxu0
  %v1059 = vadd.f32 %v1037, %v1058
  %v1060 = vpop.f32.mrf.mxu0
  %v1061 = vadd.f32 %v1037, %v1060
  %1062 = vmatmul.bf16.gmra.mxu0 %v135
  %v1063 = vpop.f32.mrf.mxu0
  %v1064 = vadd.f32 %v1037, %v1063
  %v1065 = vpop.f32.mrf.mxu0
  %v1066 = vadd.f32 %v1037, %v1065
  %1067 = vdwg.mxu0
  %v1068 = vmax.f32 %v1049, 0.0
  %v1069 = vmax.f32 %v1051, 0.0
  %v1070 = vmax.f32 %v1054, 0.0
  %v1071 = vmax.f32 %v1056, 0.0
  %v1072 = vmax.f32 %v1059, 0.0
  %v1073 = vmax.f32 %v1061, 0.0
  %v1074 = vmax.f32 %v1064, 0.0
  %v1075 = vmax.f32 %v1066, 0.0
  %v1076 = vpack.c.bf16 %v1069, %v1068
  %v1077 = vpack.c.bf16 %v1071, %v1070
  %v1078 = vpack.c.bf16 %v1073, %v1072
  %v1079 = vpack.c.bf16 %v1075, %v1074
  %v1081 = vperm.slane %v38, 0
  %v1099 = vunpack.c.l.b16 %v56
  %v1100 = vunpack.c.l.b16 %v57
  %v1101 = vunpack.c.l.b16 %v58
  %v1102 = vunpack.c.l.b16 %v59
  %v1103 = vunpack.c.l.b16 %v60
  %v1104 = vunpack.c.l.b16 %v61
  %v1105 = vunpack.c.l.b16 %v62
  %v1106 = vunpack.c.l.b16 %v63
  %v1107 = vunpack.c.l.b16 %v64
  %v1108 = vunpack.c.l.b16 %v65
  %v1109 = vunpack.c.l.b16 %v66
  %v1110 = vunpack.c.l.b16 %v67
  %v1111 = vunpack.c.l.b16 %v68
  %v1112 = vunpack.c.l.b16 %v69
  %v1113 = vunpack.c.l.b16 %v70
  %v1114 = vunpack.c.l.b16 %v71
  %v1115 = vpack.c.b16 %v1100, %v1099
  %v1116 = vpack.c.b16 %v1102, %v1101
  %v1117 = vpack.c.b16 %v1104, %v1103
  %v1118 = vpack.c.b16 %v1106, %v1105
  %v1119 = vpack.c.b16 %v1108, %v1107
  %v1120 = vpack.c.b16 %v1110, %v1109
  %v1121 = vpack.c.b16 %v1112, %v1111
  %v1122 = vpack.c.b16 %v1114, %v1113
  %1131 = vmatpush.bf16.msra.mxu0 %v1122
  %1132 = vmatpush.bf16.msra.mxu0 %v1121
  %1133 = vmatpush.bf16.msra.mxu0 %v1120
  %1134 = vmatpush.bf16.msra.mxu0 %v1119
  %1135 = vmatpush.bf16.msra.mxu0 %v1118
  %1136 = vmatpush.bf16.msra.mxu0 %v1117
  %1137 = vmatpush.bf16.msra.mxu0 %v1116
  %1138 = vmatpush.bf16.msra.mxu0 %v1115
  %1139 = vmatmul.bf16.gmra.mxu0 %v1076
  %v1140 = vpop.f32.mrf.mxu0
  %v1141 = vadd.f32 %v1081, %v1140
  %v1142 = vpop.f32.mrf.mxu0
  %v1143 = vadd.f32 %v1081, %v1142
  %1144 = vmatmul.bf16.gmra.mxu0 %v1077
  %v1145 = vpop.f32.mrf.mxu0
  %v1146 = vadd.f32 %v1081, %v1145
  %v1147 = vpop.f32.mrf.mxu0
  %v1148 = vadd.f32 %v1081, %v1147
  %1149 = vmatmul.bf16.gmra.mxu0 %v1078
  %v1150 = vpop.f32.mrf.mxu0
  %v1151 = vadd.f32 %v1081, %v1150
  %v1152 = vpop.f32.mrf.mxu0
  %v1153 = vadd.f32 %v1081, %v1152
  %1154 = vmatmul.bf16.gmra.mxu0 %v1079
  %v1155 = vpop.f32.mrf.mxu0
  %v1156 = vadd.f32 %v1081, %v1155
  %v1157 = vpop.f32.mrf.mxu0
  %v1158 = vadd.f32 %v1081, %v1157
  %1159 = vdwg.mxu0
  %v1160 = vmax.f32 %v1141, 0.0
  %v1161 = vmax.f32 %v1143, 0.0
  %v1162 = vmax.f32 %v1146, 0.0
  %v1163 = vmax.f32 %v1148, 0.0
  %v1164 = vmax.f32 %v1151, 0.0
  %v1165 = vmax.f32 %v1153, 0.0
  %v1166 = vmax.f32 %v1156, 0.0
  %v1167 = vmax.f32 %v1158, 0.0
  %v1168 = vpack.c.bf16 %v1161, %v1160
  %v1169 = vpack.c.bf16 %v1163, %v1162
  %v1170 = vpack.c.bf16 %v1165, %v1164
  %v1171 = vpack.c.bf16 %v1167, %v1166
  %v1172 = vld [vmem:[%s5] sm:$0xf]
  %v1173 = vld [vmem:[%s5 + $0x4] sm:$0xf]
  %v1174 = vld [vmem:[%s5 + $0x8] sm:$0xf]
  %v1175 = vld [vmem:[%s5 + $0xc] sm:$0xf]
  %v1176 = vld [vmem:[%s5 + $0x10] sm:$0xf]
  %v1177 = vld [vmem:[%s5 + $0x14] sm:$0xf]
  %v1178 = vld [vmem:[%s5 + $0x18] sm:$0xf]
  %v1179 = vld [vmem:[%s5 + $0x1c] sm:$0xf]
  %v1180 = vld [vmem:[%s5 + $0x20] sm:$0xf]
  %v1181 = vld [vmem:[%s5 + $0x24] sm:$0xf]
  %v1182 = vld [vmem:[%s5 + $0x28] sm:$0xf]
  %v1183 = vld [vmem:[%s5 + $0x2c] sm:$0xf]
  %v1184 = vld [vmem:[%s5 + $0x30] sm:$0xf]
  %v1185 = vld [vmem:[%s5 + $0x34] sm:$0xf]
  %v1186 = vld [vmem:[%s5 + $0x38] sm:$0xf]
  %v1187 = vld [vmem:[%s5 + $0x3c] sm:$0xf]
  %v1189 = vperm.slane %v39, 0
  %v1207 = vunpack.c.l.b16 %v1172
  %v1208 = vunpack.c.l.b16 %v1173
  %v1209 = vunpack.c.l.b16 %v1174
  %v1210 = vunpack.c.l.b16 %v1175
  %v1211 = vunpack.c.l.b16 %v1176
  %v1212 = vunpack.c.l.b16 %v1177
  %v1213 = vunpack.c.l.b16 %v1178
  %v1214 = vunpack.c.l.b16 %v1179
  %v1215 = vunpack.c.l.b16 %v1180
  %v1216 = vunpack.c.l.b16 %v1181
  %v1217 = vunpack.c.l.b16 %v1182
  %v1218 = vunpack.c.l.b16 %v1183
  %v1219 = vunpack.c.l.b16 %v1184
  %v1220 = vunpack.c.l.b16 %v1185
  %v1221 = vunpack.c.l.b16 %v1186
  %v1222 = vunpack.c.l.b16 %v1187
  %v1223 = vpack.c.b16 %v1208, %v1207
  %v1224 = vpack.c.b16 %v1210, %v1209
  %v1225 = vpack.c.b16 %v1212, %v1211
  %v1226 = vpack.c.b16 %v1214, %v1213
  %v1227 = vpack.c.b16 %v1216, %v1215
  %v1228 = vpack.c.b16 %v1218, %v1217
  %v1229 = vpack.c.b16 %v1220, %v1219
  %v1230 = vpack.c.b16 %v1222, %v1221
  %1239 = vmatpush.bf16.msra.mxu0 %v1230
  %1240 = vmatpush.bf16.msra.mxu0 %v1229
  %1241 = vmatpush.bf16.msra.mxu0 %v1228
  %1242 = vmatpush.bf16.msra.mxu0 %v1227
  %1243 = vmatpush.bf16.msra.mxu0 %v1226
  %1244 = vmatpush.bf16.msra.mxu0 %v1225
  %1245 = vmatpush.bf16.msra.mxu0 %v1224
  %1246 = vmatpush.bf16.msra.mxu0 %v1223
  %1247 = vmatmul.bf16.gmra.mxu0 %v1168
  %v1248 = vpop.f32.mrf.mxu0
  %v1249 = vadd.f32 %v1189, %v1248
  %v1250 = vpop.f32.mrf.mxu0
  %v1251 = vadd.f32 %v1189, %v1250
  %1252 = vmatmul.bf16.gmra.mxu0 %v1169
  %v1253 = vpop.f32.mrf.mxu0
  %v1254 = vadd.f32 %v1189, %v1253
  %v1255 = vpop.f32.mrf.mxu0
  %v1256 = vadd.f32 %v1189, %v1255
  %1257 = vmatmul.bf16.gmra.mxu0 %v1170
  %v1258 = vpop.f32.mrf.mxu0
  %v1259 = vadd.f32 %v1189, %v1258
  %v1260 = vpop.f32.mrf.mxu0
  %v1261 = vadd.f32 %v1189, %v1260
  %1262 = vmatmul.bf16.gmra.mxu0 %v1171
  %v1263 = vpop.f32.mrf.mxu0
  %v1264 = vadd.f32 %v1189, %v1263
  %v1265 = vpop.f32.mrf.mxu0
  %v1266 = vadd.f32 %v1189, %v1265
  %1267 = vdwg.mxu0
  %1268 = vst [vmem:[%s7] sm:$0xff] %v1249
  %1269 = vst [vmem:[%s7 + $0x8] sm:$0xff] %v1251
  %1270 = vst [vmem:[%s7 + $0x10] sm:$0xff] %v1254
  %1271 = vst [vmem:[%s7 + $0x18] sm:$0xff] %v1256
  %1272 = vst [vmem:[%s7 + $0x20] sm:$0xff] %v1259
  %1273 = vst [vmem:[%s7 + $0x28] sm:$0xff] %v1261
  %1274 = vst [vmem:[%s7 + $0x30] sm:$0xff] %v1264
  %1275 = vst [vmem:[%s7 + $0x38] sm:$0xff] %v1266
  // Predicated region
  $region30: #{gcn_forward.1} parent=0 // pred_check
    _
  $region31: #{gcn_forward.1} parent=0 // pred_check_branch
    %1277 = sbr.rel (0) target = $region33
  $region32: #{gcn_forward.1} parent=0 // pred_region
    _
  $region33: #{gcn_forward.1} parent=0 // pred_fallthru
    _
  // Predicated region
  $region34: #{gcn_forward.1} parent=0 // pred_check
    _
  $region35: #{gcn_forward.1} parent=0 // pred_check_branch
    %1279 = sbr.rel (0) target = $region37
  $region36: #{gcn_forward.1} parent=0 // pred_region
    _
  $region37: #{gcn_forward.1} parent=0 // pred_fallthru
    _

</llo_original>
